<compile_context>
chip_gen: v7x
topology: tpu7x:2x2x1
jax: 0.10.0
libtpu: 0.0.40
codegen_flags: <defaults>
</compile_context>

<pallas_src>
import jax
import jax.numpy as jnp
from jax.experimental import pallas as pl
from jax.experimental.pallas import tpu as pltpu


# ---------------------------------------------------------------------------
# Pallas kernel: fused BN2 + ReLU + BAM gate on a channel-major, spatial-minor tile.
# ---------------------------------------------------------------------------
def bam_bn_relu_gate_kernel(x_ref, scale_ref, shift_ref, w1_ref, b1_ref,
                            w2_ref, b2_ref, o_ref):
    # x_ref / o_ref : (C, ts)   -- ts lane-dense (multiple of 128) or full extent
    # scale_ref     : (C, 1)    BN2 inference scale  gamma / sqrt(var + eps)
    # shift_ref     : (C, 1)    BN2 inference shift  beta - mean * scale
    # w1_ref        : (Ch, C)   conv1 (1x1) weight: h = W1 @ y
    # b1_ref        : (Ch, 1)
    # w2_ref        : (C, Ch)   conv2 (1x1) weight: a = W2 @ h
    # b2_ref        : (C, 1)
    y = jnp.maximum(x_ref[...] * scale_ref[...] + shift_ref[...], 0.0)   # BN2 + ReLU
    h = jnp.dot(w1_ref[...], y, preferred_element_type=jnp.float32) + b1_ref[...]
    h = jnp.maximum(h, 0.0)                                              # ReLU
    a = jnp.dot(w2_ref[...], h, preferred_element_type=jnp.float32) + b2_ref[...]
    a = jax.nn.sigmoid(a)                                                # Sigmoid
    o_ref[...] = (y * a).astype(o_ref.dtype)                             # gate


# ---------------------------------------------------------------------------
# Generation-aware sizing helpers.
# ---------------------------------------------------------------------------
_MIB = 1024 * 1024


def _vmem_capacity_bytes():
    try:
        info = pltpu.get_tpu_info()
        for attr in ("vmem_capacity_bytes", "vmem_bytes", "vmem_size_bytes"):
            v = getattr(info, attr, None)
            if v:
                return int(v)
    except Exception:
        pass
    return 128 * _MIB


def _device_kind():
    try:
        return jax.devices()[0].device_kind.lower()
    except Exception:
        return ""


def _tpu_memory_budget():
    """Returns (target_block_bytes, vmem_limit_bytes).

    In-kernel VMEM use is ~5.2x block (2x double-buffered x in + 2x out + the `a`
    full-size temporary + the small `h` temporary), so block targets are derived
    from physical VMEM with that factor in mind.
    """
    cap = _vmem_capacity_bytes()
    kind = _device_kind()
    if cap <= 64 * _MIB:
        # v7x-class: 64 MiB VMEM per TensorCore, ~3.2 TB/s HBM.  ~8 MiB blocks push
        # the ~0.35 us per-step cost below ~8%; 5.2 x 8 MiB ~= 42 MiB fits under 48.
        return 8 * _MIB, 48 * _MIB
    if "v5" in kind:
        # v5e: ~0.82 TB/s HBM -> per-step overhead already <7% at 2-4 MiB blocks.
        return 4 * _MIB, 32 * _MIB
    # v6e-class (128 MiB VMEM, ~1.4 TB/s HBM): larger blocks amortize the fixed cost
    # and lengthen the contiguous per-row DMA segments.
    return 12 * _MIB, 80 * _MIB


def _pick_spatial_tile(S, C, itemsize, target_block_bytes):
    """Pick a lane-dense spatial tile keeping a (C, ts) block ~target_block_bytes.

    Prefers an exact divisor of S (no masked tail).  If no 128-multiple >= target/2
    divides S, returns a ~target-sized tile and the caller uses a cdiv grid with a
    masked partial last block (never one giant (C, S) block)."""
    target = max(128, (target_block_bytes // (C * itemsize)) // 128 * 128)
    if S <= target:
        return S                       # full spatial extent: always a legal block
    t = target
    lo = max(128, target // 2)
    while t >= lo:
        if S % t == 0:
            return t
        t -= 128
    return target                      # masked-tail path (grid = cdiv(S, ts))


# ---------------------------------------------------------------------------
# Pallas wrapper for the fused BN2 + ReLU + BAM gate.
# ---------------------------------------------------------------------------
def bam_bn_relu_forward(x_nchw, bn_scale, bn_shift, w1, b1, w2, b2):
    """x_nchw: (N, C, H, W) f32 raw conv2 output.  bn_scale/bn_shift: (C,).
    w1: (C//8, C), b1: (C//8,), w2: (C, C//8), b2: (C,)."""
    N, C, H, W = x_nchw.shape
    Ch = w1.shape[0]
    S = H * W
    itemsize = jnp.dtype(x_nchw.dtype).itemsize

    target_block_bytes, vmem_limit = _tpu_memory_budget()
    ts = _pick_spatial_tile(S, C, itemsize, target_block_bytes)
    num_s = pl.cdiv(S, ts)

    # v7x megacore: both TensorCores shard the "parallel" grid axes; never emit a
    # (1, 1) grid.  Splitting costs ~0.35 us on single-TC chips (negligible).
    if N * num_s == 1 and ts % 256 == 0:
        ts //= 2
        num_s = 2

    # NCHW is contiguous in (..., H, W): this reshape is free (no transpose/copy).
    x2 = x_nchw.reshape(N * C, S)
    scale_col = bn_scale.reshape(C, 1).astype(jnp.float32)
    shift_col = bn_shift.reshape(C, 1).astype(jnp.float32)
    b1_col = b1.reshape(Ch, 1)
    b2_col = b2.reshape(C, 1)

    n_pix = N * S
    cost = pl.CostEstimate(
        flops=n_pix * (4 * C * Ch + 7 * C),
        transcendentals=2 * n_pix * C,                           # sigmoid ~ exp + recip
        bytes_accessed=2 * n_pix * C * itemsize                  # read x + write out
        + (w1.size + w2.size + 4 * C + Ch) * itemsize,
    )

    out2 = pl.pallas_call(
        bam_bn_relu_gate_kernel,
        out_shape=jax.ShapeDtypeStruct((N * C, S), x2.dtype),
        grid_spec=pltpu.PrefetchScalarGridSpec(
            num_scalar_prefetch=0,
            grid=(N, num_s),
            in_specs=[
                pl.BlockSpec((C, ts), lambda n, s: (n, s)),      # x tile (lane-dense)
                pl.BlockSpec((C, 1), lambda n, s: (0, 0)),       # BN2 scale (resident)
                pl.BlockSpec((C, 1), lambda n, s: (0, 0)),       # BN2 shift (resident)
                pl.BlockSpec((Ch, C), lambda n, s: (0, 0)),      # w1 (resident)
                pl.BlockSpec((Ch, 1), lambda n, s: (0, 0)),      # b1 (resident)
                pl.BlockSpec((C, Ch), lambda n, s: (0, 0)),      # w2 (resident)
                pl.BlockSpec((C, 1), lambda n, s: (0, 0)),       # b2 (resident)
            ],
            out_specs=pl.BlockSpec((C, ts), lambda n, s: (n, s)),
        ),
        compiler_params=pltpu.CompilerParams(
            dimension_semantics=("parallel", "parallel"),
            vmem_limit_bytes=vmem_limit,
        ),
        cost_estimate=cost,
    )(x2, scale_col, shift_col, w1, b1_col, w2, b2_col)

    return out2.reshape(N, C, H, W)


def bam_reference(x, w1, b1, w2, b2):
    # Pure-JAX reference of the BAM gate (1x1 convs as einsums over C), NCHW.
    h = jnp.einsum("nchw,oc->nohw", x, w1) + b1[None, :, None, None]
    h = jnp.maximum(h, 0.0)
    a = jnp.einsum("nchw,oc->nohw", h, w2) + b2[None, :, None, None]
    return x * jax.nn.sigmoid(a)


# ---------------------------------------------------------------------------
# Non-Pallas pieces of DecoderBlock (plain XLA ops).
# ---------------------------------------------------------------------------
def conv_transpose_2x2(x, w, b):
    """PyTorch ConvTranspose2d(Cin, Cout, 2, stride=2): w (Cin, Cout, 2, 2)."""
    N, Cin, H, W = x.shape
    Cout = w.shape[1]
    y = jnp.einsum("nchw,copq->nohpwq", x, w).reshape(N, Cout, 2 * H, 2 * W)
    return y + b[None, :, None, None]


def conv2d_3x3(x, w, b):
    y = jax.lax.conv_general_dilated(
        x, w, window_strides=(1, 1), padding=((1, 1), (1, 1)),
        dimension_numbers=("NCHW", "OIHW", "NCHW"))
    return y + b[None, :, None, None]


def batchnorm2d(x, gamma, beta, mean, var, eps=1e-5):
    inv = gamma / jnp.sqrt(var + eps)
    return x * inv[None, :, None, None] + (beta - mean * inv)[None, :, None, None]


def decoder_block_forward(x, skip, p, *, use_pallas_bam=True, eps=1e-5):
    up = conv_transpose_2x2(x, p["up_w"], p["up_b"])
    cat = jnp.concatenate([up, skip], axis=1)
    h = conv2d_3x3(cat, p["c1_w"], p["c1_b"])
    h = jnp.maximum(batchnorm2d(h, p["bn1_g"], p["bn1_b"], p["bn1_m"], p["bn1_v"]), 0.0)
    h = conv2d_3x3(h, p["c2_w"], p["c2_b"])
    C = h.shape[1]
    if use_pallas_bam and C % 8 == 0:
        # BN2 + ReLU folded into the Pallas BAM kernel (one fewer elementwise HBM
        # pass over the feature map).  C must be a multiple of 8 for the (C, ts)
        # f32 block; otherwise fall through to the fused-XLA path.
        inv = p["bn2_g"] / jnp.sqrt(p["bn2_v"] + eps)
        scale = inv
        shift = p["bn2_b"] - p["bn2_m"] * inv
        return bam_bn_relu_forward(h, scale, shift,
                                   p["a1_w"], p["a1_b"], p["a2_w"], p["a2_b"])
    h = jnp.maximum(batchnorm2d(h, p["bn2_g"], p["bn2_b"], p["bn2_m"], p["bn2_v"],
                                eps=eps), 0.0)
    return bam_reference(h, p["a1_w"], p["a1_b"], p["a2_w"], p["a2_b"])


if __name__ == "__main__":
    # Small shapes consistent with DecoderBlock: in_channels=64 -> out_channels=32
    # (BAM requires out_channels >= 8).  x is 8x8, upconv doubles to 16x16, skip is
    # the complementary 32-channel 16x16 feature map.
    N, Cin, Cout, H, W = 2, 64, 32, 8, 8
    Ch = Cout // 8

    key = jax.random.PRNGKey(0)
    ks = jax.random.split(key, 24)

    def rn(k, shape, scale=0.1):
        return scale * jax.random.normal(k, shape, dtype=jnp.float32)

    params = dict(
        up_w=rn(ks[0], (Cin, Cout, 2, 2)),
        up_b=rn(ks[1], (Cout,)),
        c1_w=rn(ks[2], (Cout, Cin, 3, 3)),
        c1_b=rn(ks[3], (Cout,)),
        bn1_g=1.0 + rn(ks[4], (Cout,)),
        bn1_b=rn(ks[5], (Cout,)),
        bn1_m=rn(ks[6], (Cout,)),
        bn1_v=1.0 + 0.1 * jnp.abs(jax.random.normal(ks[7], (Cout,), dtype=jnp.float32)),
        c2_w=rn(ks[8], (Cout, Cout, 3, 3)),
        c2_b=rn(ks[9], (Cout,)),
        bn2_g=1.0 + rn(ks[10], (Cout,)),
        bn2_b=rn(ks[11], (Cout,)),
        bn2_m=rn(ks[12], (Cout,)),
        bn2_v=1.0 + 0.1 * jnp.abs(jax.random.normal(ks[13], (Cout,), dtype=jnp.float32)),
        a1_w=rn(ks[14], (Ch, Cout)),
        a1_b=rn(ks[15], (Ch,)),
        a2_w=rn(ks[16], (Cout, Ch)),
        a2_b=rn(ks[17], (Cout,)),
    )

    x = rn(ks[18], (N, Cin, H, W), scale=1.0)
    skip = rn(ks[19], (N, Cin - Cout, 2 * H, 2 * W), scale=1.0)

    out = decoder_block_forward(x, skip, params, use_pallas_bam=True)
    out = jax.block_until_ready(out)

    ref = decoder_block_forward(x, skip, params, use_pallas_bam=False)
    ref = jax.block_until_ready(ref)

    assert out.shape == (N, Cout, 2 * H, 2 * W)
    assert jnp.allclose(out, ref, atol=1e-4, rtol=1e-4), "mismatch vs reference"

    print("KERNEL_OK")
</pallas_src>

<mosaic_0001>
module attributes {stable_mosaic.version = 11 : i64} {
  func.func @bam_bn_relu_gate_kernel(%arg0: i32, %arg1: i32, %arg2: memref<32x256xf32, #tpu.memory_space<vmem>>, %arg3: memref<32x1xf32, #tpu.memory_space<vmem>>, %arg4: memref<32x1xf32, #tpu.memory_space<vmem>>, %arg5: memref<4x32xf32, #tpu.memory_space<vmem>>, %arg6: memref<4x1xf32, #tpu.memory_space<vmem>>, %arg7: memref<32x4xf32, #tpu.memory_space<vmem>>, %arg8: memref<32x1xf32, #tpu.memory_space<vmem>>, %arg9: memref<32x256xf32, #tpu.memory_space<vmem>>) attributes {dimension_semantics = [#tpu.dimension_semantics<parallel>, #tpu.dimension_semantics<parallel>], iteration_bounds = array<i64: 2, 1>, scalar_prefetch = 0 : i64, scratch_operands = 0 : i64, tpu.core_type = #tpu.core_type<tc>, window_params = [{transform_indices = @transform_0, window_bounds = array<i64: 32, 256>}, {pipeline_mode = #tpu.pipeline_mode<synchronous>, transform_indices = @transform_1, window_bounds = array<i64: 32, 1>}, {pipeline_mode = #tpu.pipeline_mode<synchronous>, transform_indices = @transform_2, window_bounds = array<i64: 32, 1>}, {pipeline_mode = #tpu.pipeline_mode<synchronous>, transform_indices = @transform_3, window_bounds = array<i64: 4, 32>}, {pipeline_mode = #tpu.pipeline_mode<synchronous>, transform_indices = @transform_4, window_bounds = array<i64: 4, 1>}, {pipeline_mode = #tpu.pipeline_mode<synchronous>, transform_indices = @transform_5, window_bounds = array<i64: 32, 4>}, {pipeline_mode = #tpu.pipeline_mode<synchronous>, transform_indices = @transform_6, window_bounds = array<i64: 32, 1>}, {transform_indices = @transform_7, window_bounds = array<i64: 32, 256>}]} {
    %c0 = arith.constant 0 : index
    %c0_0 = arith.constant 0 : index
    %0 = vector.load %arg2[%c0, %c0_0] : memref<32x256xf32, #tpu.memory_space<vmem>>, vector<32x256xf32>
    %c0_1 = arith.constant 0 : index
    %c0_2 = arith.constant 0 : index
    %1 = vector.load %arg3[%c0_1, %c0_2] : memref<32x1xf32, #tpu.memory_space<vmem>>, vector<32x1xf32>
    %2 = vector.broadcast %1 : vector<32x1xf32> to vector<32x256xf32>
    %3 = arith.mulf %0, %2 : vector<32x256xf32>
    %c0_3 = arith.constant 0 : index
    %c0_4 = arith.constant 0 : index
    %4 = vector.load %arg4[%c0_3, %c0_4] : memref<32x1xf32, #tpu.memory_space<vmem>>, vector<32x1xf32>
    %5 = vector.broadcast %4 : vector<32x1xf32> to vector<32x256xf32>
    %6 = arith.addf %3, %5 : vector<32x256xf32>
    %cst = arith.constant 0.000000e+00 : f32
    %7 = vector.broadcast %cst : f32 to vector<32x256xf32>
    %8 = arith.maximumf %6, %7 : vector<32x256xf32>
    %c0_5 = arith.constant 0 : index
    %c0_6 = arith.constant 0 : index
    %9 = vector.load %arg5[%c0_5, %c0_6] : memref<4x32xf32, #tpu.memory_space<vmem>>, vector<4x32xf32>
    %cst_7 = arith.constant dense<0.000000e+00> : vector<4x256xf32>
    %10 = tpu.matmul %9, %8, %cst_7 {dimension_numbers = #tpu.dot_dimension_numbers<[1], [0], [0], [1], [0, 0, 1, 1], [], []>} : vector<4x32xf32>, vector<32x256xf32>, vector<4x256xf32> -> vector<4x256xf32>
    %c0_8 = arith.constant 0 : index
    %c0_9 = arith.constant 0 : index
    %11 = vector.load %arg6[%c0_8, %c0_9] : memref<4x1xf32, #tpu.memory_space<vmem>>, vector<4x1xf32>
    %12 = vector.broadcast %11 : vector<4x1xf32> to vector<4x256xf32>
    %13 = arith.addf %10, %12 : vector<4x256xf32>
    %cst_10 = arith.constant 0.000000e+00 : f32
    %14 = vector.broadcast %cst_10 : f32 to vector<4x256xf32>
    %15 = arith.maximumf %13, %14 : vector<4x256xf32>
    %c0_11 = arith.constant 0 : index
    %c0_12 = arith.constant 0 : index
    %16 = vector.load %arg7[%c0_11, %c0_12] : memref<32x4xf32, #tpu.memory_space<vmem>>, vector<32x4xf32>
    %cst_13 = arith.constant dense<0.000000e+00> : vector<32x256xf32>
    %17 = tpu.matmul %16, %15, %cst_13 {dimension_numbers = #tpu.dot_dimension_numbers<[1], [0], [0], [1], [0, 0, 1, 1], [], []>} : vector<32x4xf32>, vector<4x256xf32>, vector<32x256xf32> -> vector<32x256xf32>
    %c0_14 = arith.constant 0 : index
    %c0_15 = arith.constant 0 : index
    %18 = vector.load %arg8[%c0_14, %c0_15] : memref<32x1xf32, #tpu.memory_space<vmem>>, vector<32x1xf32>
    %19 = vector.broadcast %18 : vector<32x1xf32> to vector<32x256xf32>
    %20 = arith.addf %17, %19 : vector<32x256xf32>
    %21 = arith.negf %20 : vector<32x256xf32>
    %22 = math.exp %21 : vector<32x256xf32>
    %cst_16 = arith.constant 1.000000e+00 : f32
    %23 = vector.broadcast %cst_16 : f32 to vector<32x256xf32>
    %24 = arith.addf %23, %22 : vector<32x256xf32>
    %25 = arith.divf %23, %24 : vector<32x256xf32>
    %26 = arith.mulf %8, %25 : vector<32x256xf32>
    %c0_17 = arith.constant 0 : index
    %c0_18 = arith.constant 0 : index
    %27 = vector.load %arg9[%c0_17, %c0_18] : memref<32x256xf32, #tpu.memory_space<vmem>>, vector<32x256xf32>
    tpu.vector_store %arg9[%c0_17, %c0_18], %26 {strides = array<i32>} : memref<32x256xf32, #tpu.memory_space<vmem>>, vector<32x256xf32>,
    return
  }
  func.func @transform_0(%arg0: i32, %arg1: i32) -> (i32, i32) {
    %c0_i32 = arith.constant 0 : i32
    return %arg0, %arg1 : i32, i32
  }
  func.func @transform_1(%arg0: i32, %arg1: i32) -> (i32, i32) {
    %c0_i32 = arith.constant 0 : i32
    %c0_i32_0 = arith.constant 0 : i32
    %c0_i32_1 = arith.constant 0 : i32
    return %c0_i32, %c0_i32_0 : i32, i32
  }
  func.func @transform_2(%arg0: i32, %arg1: i32) -> (i32, i32) {
    %c0_i32 = arith.constant 0 : i32
    %c0_i32_0 = arith.constant 0 : i32
    %c0_i32_1 = arith.constant 0 : i32
    return %c0_i32, %c0_i32_0 : i32, i32
  }
  func.func @transform_3(%arg0: i32, %arg1: i32) -> (i32, i32) {
    %c0_i32 = arith.constant 0 : i32
    %c0_i32_0 = arith.constant 0 : i32
    %c0_i32_1 = arith.constant 0 : i32
    return %c0_i32, %c0_i32_0 : i32, i32
  }
  func.func @transform_4(%arg0: i32, %arg1: i32) -> (i32, i32) {
    %c0_i32 = arith.constant 0 : i32
    %c0_i32_0 = arith.constant 0 : i32
    %c0_i32_1 = arith.constant 0 : i32
    return %c0_i32, %c0_i32_0 : i32, i32
  }
  func.func @transform_5(%arg0: i32, %arg1: i32) -> (i32, i32) {
    %c0_i32 = arith.constant 0 : i32
    %c0_i32_0 = arith.constant 0 : i32
    %c0_i32_1 = arith.constant 0 : i32
    return %c0_i32, %c0_i32_0 : i32, i32
  }
  func.func @transform_6(%arg0: i32, %arg1: i32) -> (i32, i32) {
    %c0_i32 = arith.constant 0 : i32
    %c0_i32_0 = arith.constant 0 : i32
    %c0_i32_1 = arith.constant 0 : i32
    return %c0_i32, %c0_i32_0 : i32, i32
  }
  func.func @transform_7(%arg0: i32, %arg1: i32) -> (i32, i32) {
    %c0_i32 = arith.constant 0 : i32
    return %arg0, %arg1 : i32, i32
  }
}

</mosaic_0001>

<llo_original>
// kernel: tpu_custom_call.1
$region0: #{tpu_custom_call.1}
  #allocation0 [shape = 'u32[]', space=smem, size = 0x4, offset = 0x4, fixed_abs, tag = 'smem constant byte address 0x4 - core index']
  #allocation1 [shape = 'u32[144,128]{1,0:T(1,128)}', space=vmem, size = 0x12000, scoped, tag = 'internal scratch']
  %s0 = inlined_call_operand.hbm [shape: f32[64,256], index: 0, kind: input, shape index: {}]
  %s1 = inlined_call_operand.hbm [shape: f32[32,1], index: 1, kind: input, shape index: {}]
  %s2 = inlined_call_operand.hbm [shape: f32[32,1], index: 2, kind: input, shape index: {}]
  %s3 = inlined_call_operand.hbm [shape: f32[4,32], index: 3, kind: input, shape index: {}]
  %s4 = inlined_call_operand.hbm [shape: f32[4,1], index: 4, kind: input, shape index: {}]
  %s5 = inlined_call_operand.hbm [shape: f32[32,4], index: 5, kind: input, shape index: {}]
  %s6 = inlined_call_operand.hbm [shape: f32[32,1], index: 6, kind: input, shape index: {}]
  %s7 = inlined_call_operand.hbm [shape: f32[64,256], index: 7, kind: output, shape index: {}]
  %s8 = sld [smem:[#allocation0]]
  $region89: #{tpu_custom_call.1} parent=0
    _
  %s10 = ssub.s32 1, %s8
  %s11 = scalar_select 0, %s10, %s8
  $region1: #{tpu_custom_call.1} parent=0
    #allocation2 [shape = 'u8[65536]{0}', space=vmem, size = 0x10000, scoped, tag = 'input window, operand 0']
    #allocation3 [shape = 's32[2]{0}', space=sflag, size = 0x8, scoped, tag = 'scoped memory for tpu_custom_call.1']
    #allocation4 [shape = 's32[2]{0}', space=sflag, size = 0x8, scoped, tag = 'scoped memory for tpu_custom_call.1']
    #allocation5 [shape = 'u8[16384]{0}', space=vmem, size = 0x4000, scoped, tag = 'input window, operand 1, single buffered']
    #allocation6 [shape = 's32[1]{0}', space=sflag, size = 0x4, scoped, tag = 'scoped memory for tpu_custom_call.1']
    #allocation7 [shape = 'u8[16384]{0}', space=vmem, size = 0x4000, scoped, tag = 'input window, operand 2, single buffered']
    #allocation8 [shape = 'u8[2048]{0}', space=vmem, size = 0x800, scoped, tag = 'input window, operand 3, single buffered']
    #allocation9 [shape = 's32[1]{0}', space=sflag, size = 0x4, scoped, tag = 'scoped memory for tpu_custom_call.1']
    #allocation10 [shape = 'u8[2048]{0}', space=vmem, size = 0x800, scoped, tag = 'input window, operand 4, single buffered']
    #allocation11 [shape = 'u8[16384]{0}', space=vmem, size = 0x4000, scoped, tag = 'input window, operand 5, single buffered']
    #allocation12 [shape = 's32[1]{0}', space=sflag, size = 0x4, scoped, tag = 'scoped memory for tpu_custom_call.1']
    #allocation13 [shape = 'u8[16384]{0}', space=vmem, size = 0x4000, scoped, tag = 'input window, operand 6, single buffered']
    #allocation14 [shape = 'u8[65536]{0}', space=vmem, size = 0x10000, scoped, tag = 'output window, operand 0']
    %12 = vsyncpa [#allocation3], 0
    %s13 = scalar_lea.sflag [#allocation3], 1
    %14 = vsyncpa %s13, 0
    %15 = vsyncpa [#allocation6], 0
    %16 = vsyncpa [#allocation9], 0
    %17 = vsyncpa [#allocation12], 0
    %18 = vsyncpa [#allocation4], 0
    %s19 = scalar_lea.sflag [#allocation4], 1
    %20 = vsyncpa %s19, 0
    loop: start=0, step=1, limit=4
    $region2: #{tpu_custom_call.1} parent=1 // loop_pre_header
      _
    $region3: #{tpu_custom_call.1} parent=1 // loop_header
      %s22 = sphi 0, %s26
      %p23 = scmp.ge.s32.totalorder %s22, 4
      %s29 = sphi 0, %s41
      %s30 = sphi 0, %s37
      %s31 = sphi 0, %s29
      %s32 = sphi 0, %s30
      %s33 = sphi 0, %s31
      %s34 = sphi 0, %s32
      %s46 = sphi 0, %s48
      %s49 = sphi 0, %s46
      %s50 = sphi 0, %s49
      %s66 = sphi 0, %s50
      %s70 = sphi 0, %s70
      %s72 = sphi 0, %s70
      %s73 = sphi 0, %s72
      %s87 = sphi 0, %s73
      %s91 = sphi 0, %s91
      %s93 = sphi 0, %s91
      %s94 = sphi 0, %s93
      %s108 = sphi 0, %s94
      %s112 = sphi 0, %s112
      %s114 = sphi 0, %s112
      %s115 = sphi 0, %s114
      %s129 = sphi 0, %s115
      %s133 = sphi 0, %s133
      %s135 = sphi 0, %s133
      %s136 = sphi 0, %s135
      %s150 = sphi 0, %s136
      %s154 = sphi 0, %s154
      %s156 = sphi 0, %s154
      %s157 = sphi 0, %s156
      %s171 = sphi 0, %s157
      %s175 = sphi 0, %s175
      %s177 = sphi 0, %s175
      %s178 = sphi 0, %s177
      %s192 = sphi 0, %s178
      %s200 = sphi 0, %s202
      %s203 = sphi 0, %s200
      %s204 = sphi 0, %s203
      %s220 = sphi 0, %s204
    $region4: #{tpu_custom_call.1} parent=1 // loop_header_branch
      %25 = sbr.rel (%p23) target = $region8
    $region5: #{tpu_custom_call.1} parent=1 // loop_body
      %s27 = ssub.s32 %s22, 1
      %s28 = ssub.s32 %s22, 2
      %s35 = sadd.s32 1, %s30
      %p36 = scmp.ge.s32.totalorder %s35, 1
      %s37 = scalar_select %p36, 0, %s35
      %s38 = sadd.s32 1, %s29
      %s39 = scalar_select %p36, %s38, %s29
      %p40 = scmp.ge.s32.totalorder %s39, 2
      %s41 = scalar_select %p40, 0, %s39
      %s42 = ssub.s32 %s29, %s41
      %s43 = ssub.s32 %s30, %s37
      %s44 = sor.u32 %s42, %s43
      %p45 = scmp.eq.s32.totalorder %s44, 0
      %s47 = sadd.s32 %s46, 1
      %s48 = scalar_select %p45, %s46, %s47
      %p51 = pneg %p45
      %p52 = scmp.eq.s32.totalorder %s22, 1
      %p53 = por %p51, %p52
      %p54 = scmp.ne.s32.totalorder %s46, %s49
      %p55 = scmp.eq.s32.totalorder %s22, 0
      %p56 = por %p54, %p55
      %p57 = scmp.ne.s32.totalorder %s46, %s49
      %p58 = scmp.eq.s32.totalorder %s27, 1
      %p59 = por %p57, %p58
      %p60 = scmp.ne.s32.totalorder %s49, %s50
      %p61 = scmp.eq.s32.totalorder %s27, 0
      %p62 = por %p60, %p61
      %p63 = scmp.ne.s32.totalorder %s49, %s50
      %p64 = scmp.eq.s32.totalorder %s28, 1
      %p65 = por %p63, %p64
      %p67 = scmp.ne.s32.totalorder %s50, %s66
      %p68 = scmp.eq.s32.totalorder %s28, 0
      %p69 = por %p67, %p68
      %s71 = sadd.s32 %s70, 1
      %p74 = scmp.eq.s32.totalorder %s22, 1
      %p75 = scmp.ne.s32.totalorder %s70, %s72
      %p76 = scmp.eq.s32.totalorder %s22, 0
      %p77 = por %p75, %p76
      %p78 = scmp.ne.s32.totalorder %s70, %s72
      %p79 = scmp.eq.s32.totalorder %s27, 1
      %p80 = por %p78, %p79
      %p81 = scmp.ne.s32.totalorder %s72, %s73
      %p82 = scmp.eq.s32.totalorder %s27, 0
      %p83 = por %p81, %p82
      %p84 = scmp.ne.s32.totalorder %s72, %s73
      %p85 = scmp.eq.s32.totalorder %s28, 1
      %p86 = por %p84, %p85
      %p88 = scmp.ne.s32.totalorder %s73, %s87
      %p89 = scmp.eq.s32.totalorder %s28, 0
      %p90 = por %p88, %p89
      %s92 = sadd.s32 %s91, 1
      %p95 = scmp.eq.s32.totalorder %s22, 1
      %p96 = scmp.ne.s32.totalorder %s91, %s93
      %p97 = scmp.eq.s32.totalorder %s22, 0
      %p98 = por %p96, %p97
      %p99 = scmp.ne.s32.totalorder %s91, %s93
      %p100 = scmp.eq.s32.totalorder %s27, 1
      %p101 = por %p99, %p100
      %p102 = scmp.ne.s32.totalorder %s93, %s94
      %p103 = scmp.eq.s32.totalorder %s27, 0
      %p104 = por %p102, %p103
      %p105 = scmp.ne.s32.totalorder %s93, %s94
      %p106 = scmp.eq.s32.totalorder %s28, 1
      %p107 = por %p105, %p106
      %p109 = scmp.ne.s32.totalorder %s94, %s108
      %p110 = scmp.eq.s32.totalorder %s28, 0
      %p111 = por %p109, %p110
      %s113 = sadd.s32 %s112, 1
      %p116 = scmp.eq.s32.totalorder %s22, 1
      %p117 = scmp.ne.s32.totalorder %s112, %s114
      %p118 = scmp.eq.s32.totalorder %s22, 0
      %p119 = por %p117, %p118
      %p120 = scmp.ne.s32.totalorder %s112, %s114
      %p121 = scmp.eq.s32.totalorder %s27, 1
      %p122 = por %p120, %p121
      %p123 = scmp.ne.s32.totalorder %s114, %s115
      %p124 = scmp.eq.s32.totalorder %s27, 0
      %p125 = por %p123, %p124
      %p126 = scmp.ne.s32.totalorder %s114, %s115
      %p127 = scmp.eq.s32.totalorder %s28, 1
      %p128 = por %p126, %p127
      %p130 = scmp.ne.s32.totalorder %s115, %s129
      %p131 = scmp.eq.s32.totalorder %s28, 0
      %p132 = por %p130, %p131
      %s134 = sadd.s32 %s133, 1
      %p137 = scmp.eq.s32.totalorder %s22, 1
      %p138 = scmp.ne.s32.totalorder %s133, %s135
      %p139 = scmp.eq.s32.totalorder %s22, 0
      %p140 = por %p138, %p139
      %p141 = scmp.ne.s32.totalorder %s133, %s135
      %p142 = scmp.eq.s32.totalorder %s27, 1
      %p143 = por %p141, %p142
      %p144 = scmp.ne.s32.totalorder %s135, %s136
      %p145 = scmp.eq.s32.totalorder %s27, 0
      %p146 = por %p144, %p145
      %p147 = scmp.ne.s32.totalorder %s135, %s136
      %p148 = scmp.eq.s32.totalorder %s28, 1
      %p149 = por %p147, %p148
      %p151 = scmp.ne.s32.totalorder %s136, %s150
      %p152 = scmp.eq.s32.totalorder %s28, 0
      %p153 = por %p151, %p152
      %s155 = sadd.s32 %s154, 1
      %p158 = scmp.eq.s32.totalorder %s22, 1
      %p159 = scmp.ne.s32.totalorder %s154, %s156
      %p160 = scmp.eq.s32.totalorder %s22, 0
      %p161 = por %p159, %p160
      %p162 = scmp.ne.s32.totalorder %s154, %s156
      %p163 = scmp.eq.s32.totalorder %s27, 1
      %p164 = por %p162, %p163
      %p165 = scmp.ne.s32.totalorder %s156, %s157
      %p166 = scmp.eq.s32.totalorder %s27, 0
      %p167 = por %p165, %p166
      %p168 = scmp.ne.s32.totalorder %s156, %s157
      %p169 = scmp.eq.s32.totalorder %s28, 1
      %p170 = por %p168, %p169
      %p172 = scmp.ne.s32.totalorder %s157, %s171
      %p173 = scmp.eq.s32.totalorder %s28, 0
      %p174 = por %p172, %p173
      %s176 = sadd.s32 %s175, 1
      %p179 = scmp.eq.s32.totalorder %s22, 1
      %p180 = scmp.ne.s32.totalorder %s175, %s177
      %p181 = scmp.eq.s32.totalorder %s22, 0
      %p182 = por %p180, %p181
      %p183 = scmp.ne.s32.totalorder %s175, %s177
      %p184 = scmp.eq.s32.totalorder %s27, 1
      %p185 = por %p183, %p184
      %p186 = scmp.ne.s32.totalorder %s177, %s178
      %p187 = scmp.eq.s32.totalorder %s27, 0
      %p188 = por %p186, %p187
      %p189 = scmp.ne.s32.totalorder %s177, %s178
      %p190 = scmp.eq.s32.totalorder %s28, 1
      %p191 = por %p189, %p190
      %p193 = scmp.ne.s32.totalorder %s178, %s192
      %p194 = scmp.eq.s32.totalorder %s28, 0
      %p195 = por %p193, %p194
      %s196 = ssub.s32 %s29, %s41
      %s197 = ssub.s32 %s30, %s37
      %s198 = sor.u32 %s196, %s197
      %p199 = scmp.eq.s32.totalorder %s198, 0
      %s201 = sadd.s32 %s200, 1
      %s202 = scalar_select %p199, %s200, %s201
      %p205 = pneg %p199
      %p206 = scmp.eq.s32.totalorder %s22, 1
      %p207 = por %p205, %p206
      %p208 = scmp.ne.s32.totalorder %s200, %s203
      %p209 = scmp.eq.s32.totalorder %s22, 0
      %p210 = por %p208, %p209
      %p211 = scmp.ne.s32.totalorder %s200, %s203
      %p212 = scmp.eq.s32.totalorder %s27, 1
      %p213 = por %p211, %p212
      %p214 = scmp.ne.s32.totalorder %s203, %s204
      %p215 = scmp.eq.s32.totalorder %s27, 0
      %p216 = por %p214, %p215
      %p217 = scmp.ne.s32.totalorder %s203, %s204
      %p218 = scmp.eq.s32.totalorder %s28, 1
      %p219 = por %p217, %p218
      %p221 = scmp.ne.s32.totalorder %s204, %s220
      %p222 = scmp.eq.s32.totalorder %s28, 0
      %p223 = por %p221, %p222
      %p224 = scmp.le.s32.totalorder 1, %s22
      %p225 = scmp.lt.s32.totalorder %s22, 3
      %p226 = pnand %p224, %p225
      %p227 = pneg %p226
      // Predicated region
      $region9: #{tpu_custom_call.1} parent=5 // pred_check
        _
      $region10: #{tpu_custom_call.1} parent=5 // pred_check_branch
        %229 = sbr.rel (%p226) target = $region12
      $region11: #{tpu_custom_call.1} parent=5 // pred_region
        %s230 = ssub.s32 %s22, 1
        // Predicated region
        $region13: #{tpu_custom_call.1} parent=11 // pred_check
          %p231 = pneg %p83
        $region14: #{tpu_custom_call.1} parent=11 // pred_check_branch
          %233 = sbr.rel (%p231) target = $region16
        $region15: #{tpu_custom_call.1} parent=11 // pred_region
          %s235 = ssub.s32 512, 512
          %236 = vsyncadd [#allocation6], %s235
          %s237 = sshll.u32 [#allocation5], 4
          %s238 = int_to_ptr.vmem [resolvable:$true] %s237
          %243 = dma.hbm_to_vmem [thread:$0]  %s1, 512, %s238, [#allocation6], 128, 128, 8
        $region16: #{tpu_custom_call.1} parent=11 // pred_fallthru
          _
        // Predicated region
        $region17: #{tpu_custom_call.1} parent=11 // pred_check
          %p244 = pneg %p104
        $region18: #{tpu_custom_call.1} parent=11 // pred_check_branch
          %246 = sbr.rel (%p244) target = $region20
        $region19: #{tpu_custom_call.1} parent=11 // pred_region
          %s248 = ssub.s32 512, 512
          %249 = vsyncadd [#allocation6], %s248
          %s250 = sshll.u32 [#allocation7], 4
          %s251 = int_to_ptr.vmem [resolvable:$true] %s250
          %256 = dma.hbm_to_vmem [thread:$0]  %s2, 512, %s251, [#allocation6], 128, 128, 8
        $region20: #{tpu_custom_call.1} parent=11 // pred_fallthru
          _
        // Predicated region
        $region21: #{tpu_custom_call.1} parent=11 // pred_check
          %p257 = pneg %p125
        $region22: #{tpu_custom_call.1} parent=11 // pred_check_branch
          %259 = sbr.rel (%p257) target = $region24
        $region23: #{tpu_custom_call.1} parent=11 // pred_region
          %s261 = ssub.s32 64, 64
          %262 = vsyncadd [#allocation9], %s261
          %s264 = sshll.u32 [#allocation8], 4
          %s265 = int_to_ptr.vmem [resolvable:$true] %s264
          %267 = dma.hbm_to_vmem [thread:$0]  %s3, 64, %s265, [#allocation9]
        $region24: #{tpu_custom_call.1} parent=11 // pred_fallthru
          _
        // Predicated region
        $region25: #{tpu_custom_call.1} parent=11 // pred_check
          %p268 = pneg %p146
        $region26: #{tpu_custom_call.1} parent=11 // pred_check_branch
          %270 = sbr.rel (%p268) target = $region28
        $region27: #{tpu_custom_call.1} parent=11 // pred_region
          %s272 = ssub.s32 64, 64
          %273 = vsyncadd [#allocation9], %s272
          %s275 = sshll.u32 [#allocation10], 4
          %s276 = int_to_ptr.vmem [resolvable:$true] %s275
          %278 = dma.hbm_to_vmem [thread:$0]  %s4, 64, %s276, [#allocation9]
        $region28: #{tpu_custom_call.1} parent=11 // pred_fallthru
          _
        // Predicated region
        $region29: #{tpu_custom_call.1} parent=11 // pred_check
          %p279 = pneg %p167
        $region30: #{tpu_custom_call.1} parent=11 // pred_check_branch
          %281 = sbr.rel (%p279) target = $region32
        $region31: #{tpu_custom_call.1} parent=11 // pred_region
          %s283 = ssub.s32 512, 512
          %284 = vsyncadd [#allocation12], %s283
          %s285 = sshll.u32 [#allocation11], 4
          %s286 = int_to_ptr.vmem [resolvable:$true] %s285
          %291 = dma.hbm_to_vmem [thread:$0]  %s5, 512, %s286, [#allocation12], 128, 128, 8
        $region32: #{tpu_custom_call.1} parent=11 // pred_fallthru
          _
        // Predicated region
        $region33: #{tpu_custom_call.1} parent=11 // pred_check
          %p292 = pneg %p188
        $region34: #{tpu_custom_call.1} parent=11 // pred_check_branch
          %294 = sbr.rel (%p292) target = $region36
        $region35: #{tpu_custom_call.1} parent=11 // pred_region
          %s296 = ssub.s32 512, 512
          %297 = vsyncadd [#allocation12], %s296
          %s298 = sshll.u32 [#allocation13], 4
          %s299 = int_to_ptr.vmem [resolvable:$true] %s298
          %304 = dma.hbm_to_vmem [thread:$0]  %s6, 512, %s299, [#allocation12], 128, 128, 8
        $region36: #{tpu_custom_call.1} parent=11 // pred_fallthru
          _
      $region12: #{tpu_custom_call.1} parent=5 // pred_fallthru
        _
      %p305 = scmp.lt.s32.totalorder %s22, 2
      // Predicated region
      $region37: #{tpu_custom_call.1} parent=5 // pred_check
        %p306 = pneg %p305
      $region38: #{tpu_custom_call.1} parent=5 // pred_check_branch
        %308 = sbr.rel (%p306) target = $region40
      $region39: #{tpu_custom_call.1} parent=5 // pred_region
        // Predicated region
        $region41: #{tpu_custom_call.1} parent=39 // pred_check
          %p309 = pneg %p56
        $region42: #{tpu_custom_call.1} parent=39 // pred_check_branch
          %311 = sbr.rel (%p309) target = $region44
        $region43: #{tpu_custom_call.1} parent=39 // pred_region
          %s312 = sand.u32 %s46, 1
          %s313 = scalar_lea.sflag [#allocation3], %s312
          %s314 = sand.u32 %s46, 1
          %s315 = smul.addr %s314, 64
          %s316 = scalar_lea.vmem [#allocation2], %s315
          %s317 = smul.u32 4, %s29
          %s318 = smul.u32 2, %s30
          %s320 = ssub.s32 1024, 1024
          %321 = vsyncadd %s313, %s320
          %s322 = smul.addr %s317, 2
          %s323 = sadd.s32 %s318, %s322
          %s324 = smul.addr %s323, 128
          %s325 = scalar_lea.hbm %s0, %s324
          %s326 = sshll.u32 %s316, 4
          %s327 = int_to_ptr.vmem [resolvable:$true] %s326
          %332 = dma.hbm_to_vmem [thread:$0]  %s325, 1024, %s327, %s313, 256, 256, 16
        $region44: #{tpu_custom_call.1} parent=39 // pred_fallthru
          _
      $region40: #{tpu_custom_call.1} parent=5 // pred_fallthru
        _
      %p333 = scmp.le.s32.totalorder 1, %s22
      %p334 = scmp.lt.s32.totalorder %s22, 3
      %p335 = pnand %p333, %p334
      %p336 = pneg %p335
      // Predicated region
      $region45: #{tpu_custom_call.1} parent=5 // pred_check
        _
      $region46: #{tpu_custom_call.1} parent=5 // pred_check_branch
        %338 = sbr.rel (%p335) target = $region48
      $region47: #{tpu_custom_call.1} parent=5 // pred_region
        %s339 = ssub.s32 %s22, 1
        %s340 = sand.u32 %s49, 1
        %s341 = scalar_lea.sflag [#allocation3], %s340
        %s342 = sand.u32 %s49, 1
        %s343 = smul.addr %s342, 64
        %s344 = scalar_lea.vmem [#allocation2], %s343
        // Predicated region
        $region49: #{tpu_custom_call.1} parent=47 // pred_check
          %p345 = pneg %p62
        $region50: #{tpu_custom_call.1} parent=47 // pred_check_branch
          %347 = sbr.rel (%p345) target = $region52
        $region51: #{tpu_custom_call.1} parent=47 // pred_region
          %348 = dma.done %s341, 1024
        $region52: #{tpu_custom_call.1} parent=47 // pred_fallthru
          _
        // Predicated region
        $region53: #{tpu_custom_call.1} parent=47 // pred_check
          %p349 = pneg %p83
        $region54: #{tpu_custom_call.1} parent=47 // pred_check_branch
          %351 = sbr.rel (%p349) target = $region56
        $region55: #{tpu_custom_call.1} parent=47 // pred_region
          %352 = dma.done [#allocation6], 512
        $region56: #{tpu_custom_call.1} parent=47 // pred_fallthru
          _
        // Predicated region
        $region57: #{tpu_custom_call.1} parent=47 // pred_check
          %p353 = pneg %p104
        $region58: #{tpu_custom_call.1} parent=47 // pred_check_branch
          %355 = sbr.rel (%p353) target = $region60
        $region59: #{tpu_custom_call.1} parent=47 // pred_region
          %356 = dma.done [#allocation6], 512
        $region60: #{tpu_custom_call.1} parent=47 // pred_fallthru
          _
        // Predicated region
        $region61: #{tpu_custom_call.1} parent=47 // pred_check
          %p357 = pneg %p125
        $region62: #{tpu_custom_call.1} parent=47 // pred_check_branch
          %359 = sbr.rel (%p357) target = $region64
        $region63: #{tpu_custom_call.1} parent=47 // pred_region
          %360 = dma.done [#allocation9], 64
        $region64: #{tpu_custom_call.1} parent=47 // pred_fallthru
          _
        // Predicated region
        $region65: #{tpu_custom_call.1} parent=47 // pred_check
          %p361 = pneg %p146
        $region66: #{tpu_custom_call.1} parent=47 // pred_check_branch
          %363 = sbr.rel (%p361) target = $region68
        $region67: #{tpu_custom_call.1} parent=47 // pred_region
          %364 = dma.done [#allocation9], 64
        $region68: #{tpu_custom_call.1} parent=47 // pred_fallthru
          _
        // Predicated region
        $region69: #{tpu_custom_call.1} parent=47 // pred_check
          %p365 = pneg %p167
        $region70: #{tpu_custom_call.1} parent=47 // pred_check_branch
          %367 = sbr.rel (%p365) target = $region72
        $region71: #{tpu_custom_call.1} parent=47 // pred_region
          %368 = dma.done [#allocation12], 512
        $region72: #{tpu_custom_call.1} parent=47 // pred_fallthru
          _
        // Predicated region
        $region73: #{tpu_custom_call.1} parent=47 // pred_check
          %p369 = pneg %p188
        $region74: #{tpu_custom_call.1} parent=47 // pred_check_branch
          %371 = sbr.rel (%p369) target = $region76
        $region75: #{tpu_custom_call.1} parent=47 // pred_region
          %372 = dma.done [#allocation12], 512
        $region76: #{tpu_custom_call.1} parent=47 // pred_fallthru
          _
        %s373 = sand.u32 %s49, 1
        %s374 = scalar_lea.sflag [#allocation3], %s373
        %s375 = sand.u32 %s49, 1
        %s376 = smul.addr %s375, 64
        %s377 = scalar_lea.vmem [#allocation2], %s376
        %p378 = pneg %p62
        %p379 = pneg %p59
        %p380 = pneg %p83
        %p381 = pneg %p80
        %p382 = pneg %p104
        %p383 = pneg %p101
        %p384 = pneg %p125
        %p385 = pneg %p122
        %p386 = pneg %p146
        %p387 = pneg %p143
        %p388 = pneg %p167
        %p389 = pneg %p164
        %p390 = pneg %p188
        %p391 = pneg %p185
        %p392 = pneg %p216
        %p393 = pneg %p213
        %s394 = sand.u32 %s203, 1
        %s395 = scalar_lea.sflag [#allocation4], %s394
        %s396 = sand.u32 %s203, 1
        %s397 = smul.addr %s396, 64
        %s398 = scalar_lea.vmem [#allocation14], %s397
        %s399 = smul.u32 4, %s31
        %s400 = smul.u32 2, %s32
        %s401 = smul.u32 4, %s31
        %s402 = smul.u32 2, %s32
        %v403 = vld [vmem:[%s344] sm:$0xff]
        %v404 = vld [vmem:[%s344 + $0x8] sm:$0xff]
        %v405 = vld [vmem:[%s344 + $0x10] sm:$0xff]
        %v406 = vld [vmem:[%s344 + $0x18] sm:$0xff]
        %v407 = vld [vmem:[%s344 + $0x20] sm:$0xff]
        %v408 = vld [vmem:[%s344 + $0x28] sm:$0xff]
        %v409 = vld [vmem:[%s344 + $0x30] sm:$0xff]
        %v410 = vld [vmem:[%s344 + $0x38] sm:$0xff]
        %v411 = vld [vmem:[#allocation5] sm:$0xff]
        %v412 = vld [vmem:[#allocation5 + $0x8] sm:$0xff]
        %v413 = vld [vmem:[#allocation5 + $0x10] sm:$0xff]
        %v414 = vld [vmem:[#allocation5 + $0x18] sm:$0xff]
        %416 = vset.pattern.permute.xlu0 0
        %417 = vperm.xlu0 %416, %v411
        %v418 = vpop.permute.xlu0 %417
        %421 = vset.pattern.permute.xlu0 0
        %422 = vperm.xlu0 %421, %v412
        %v423 = vpop.permute.xlu0 %422
        %426 = vset.pattern.permute.xlu0 0
        %427 = vperm.xlu0 %426, %v413
        %v428 = vpop.permute.xlu0 %427
        %431 = vset.pattern.permute.xlu0 0
        %432 = vperm.xlu0 %431, %v414
        %v433 = vpop.permute.xlu0 %432
        %v435 = vmul.f32 %v403, %v418
        %v436 = vmul.f32 %v404, %v418
        %v437 = vmul.f32 %v405, %v423
        %v438 = vmul.f32 %v406, %v423
        %v439 = vmul.f32 %v407, %v428
        %v440 = vmul.f32 %v408, %v428
        %v441 = vmul.f32 %v409, %v433
        %v442 = vmul.f32 %v410, %v433
        %v443 = vld [vmem:[#allocation7] sm:$0xff]
        %v444 = vld [vmem:[#allocation7 + $0x8] sm:$0xff]
        %v445 = vld [vmem:[#allocation7 + $0x10] sm:$0xff]
        %v446 = vld [vmem:[#allocation7 + $0x18] sm:$0xff]
        %448 = vset.pattern.permute.xlu0 0
        %449 = vperm.xlu0 %448, %v443
        %v450 = vpop.permute.xlu0 %449
        %453 = vset.pattern.permute.xlu0 0
        %454 = vperm.xlu0 %453, %v444
        %v455 = vpop.permute.xlu0 %454
        %458 = vset.pattern.permute.xlu0 0
        %459 = vperm.xlu0 %458, %v445
        %v460 = vpop.permute.xlu0 %459
        %463 = vset.pattern.permute.xlu0 0
        %464 = vperm.xlu0 %463, %v446
        %v465 = vpop.permute.xlu0 %464
        %v467 = vadd.f32 %v435, %v450
        %v468 = vadd.f32 %v436, %v450
        %v469 = vadd.f32 %v437, %v455
        %v470 = vadd.f32 %v438, %v455
        %v471 = vadd.f32 %v439, %v460
        %v472 = vadd.f32 %v440, %v460
        %v473 = vadd.f32 %v441, %v465
        %v474 = vadd.f32 %v442, %v465
        %v475 = vmax.f32 %v467, 0.0
        %v476 = vmax.f32 %v468, 0.0
        %v477 = vmax.f32 %v469, 0.0
        %v478 = vmax.f32 %v470, 0.0
        %v479 = vmax.f32 %v471, 0.0
        %v480 = vmax.f32 %v472, 0.0
        %v481 = vmax.f32 %v473, 0.0
        %v482 = vmax.f32 %v474, 0.0
        %v483 = vld [vmem:[#allocation8] sm:$0xf]
        %v484 = vld [vmem:[#allocation10] sm:$0xf]
        %486 = vset.pattern.permute.xlu0 0
        %487 = vperm.xlu0 %486, %v484
        %v488 = vpop.permute.xlu0 %487
        %vm490 = vcmask 261120
        %v492 = vsel %vm490, %v483, 0
        %494 = vmatprep.subr.mxu0 %v476
        %495 = vmatpush1.msra.mxu0 %v475
        %496 = vmatprep.subr.mxu0 %v478
        %497 = vmatpush1.msra.mxu0 %v477
        %498 = vmatprep.subr.mxu0 %v480
        %499 = vmatpush1.msra.mxu0 %v479
        %500 = vmatprep.subr.mxu0 %v482
        %501 = vmatpush1.msra.mxu0 %v481
        %502 = vmatprep.subr.mxu0 0.0
        %503 = vmatpush1.msra.mxu0 0.0
        %504 = vmatprep.subr.mxu0 0.0
        %505 = vmatpush1.msra.mxu0 0.0
        %506 = vmatprep.subr.mxu0 0.0
        %507 = vmatpush1.msra.mxu0 0.0
        %508 = vmatprep.subr.mxu0 0.0
        %509 = vmatpush1.msra.mxu0 0.0
        %510 = vmatprep.subr.mxu0 0.0
        %511 = vmatpush1.msra.mxu0 0.0
        %512 = vmatprep.subr.mxu0 0.0
        %513 = vmatpush1.msra.mxu0 0.0
        %514 = vmatprep.subr.mxu0 0.0
        %515 = vmatpush1.msra.mxu0 0.0
        %516 = vmatprep.subr.mxu0 0.0
        %517 = vmatpush1.msra.mxu0 0.0
        %518 = vmatprep.subr.mxu0 0.0
        %519 = vmatpush1.msra.mxu0 0.0
        %520 = vmatprep.subr.mxu0 0.0
        %521 = vmatpush1.msra.mxu0 0.0
        %522 = vmatprep.subr.mxu0 0.0
        %523 = vmatpush1.msra.mxu0 0.0
        %524 = vmatprep.subr.mxu0 0.0
        %525 = vmatpush1.msra.mxu0 0.0
        %526 = vmatprep.subr.mxu0 0.0
        %527 = vmatpush1.msra.mxu0 0.0
        %528 = vmatprep.subr.mxu0 0.0
        %529 = vmatpush1.msra.mxu0 0.0
        %530 = vmatprep.subr.mxu0 0.0
        %531 = vmatpush1.msra.mxu0 0.0
        %532 = vmatprep.subr.mxu0 0.0
        %533 = vmatpush1.msra.mxu0 0.0
        %534 = vmatprep.subr.mxu0 0.0
        %535 = vmatpush1.msra.mxu0 0.0
        %536 = vmatprep.subr.mxu0 0.0
        %537 = vmatpush1.msra.mxu0 0.0
        %538 = vmatprep.subr.mxu0 0.0
        %539 = vmatpush1.msra.mxu0 0.0
        %540 = vmatprep.subr.mxu0 0.0
        %541 = vmatpush1.msra.mxu0 0.0
        %542 = vmatprep.subr.mxu0 0.0
        %543 = vmatpush1.msra.mxu0 0.0
        %544 = vmatprep.subr.mxu0 0.0
        %545 = vmatpush1.msra.mxu0 0.0
        %546 = vmatprep.subr.mxu0 0.0
        %547 = vmatpush1.msra.mxu0 0.0
        %548 = vmatprep.subr.mxu0 0.0
        %549 = vmatpush1.msra.mxu0 0.0
        %550 = vmatprep.subr.mxu0 0.0
        %551 = vmatpush1.msra.mxu0 0.0
        %552 = vmatprep.subr.mxu0 0.0
        %553 = vmatpush1.msra.mxu0 0.0
        %554 = vmatprep.subr.mxu0 0.0
        %555 = vmatpush1.msra.mxu0 0.0
        %556 = vmatprep.subr.mxu0 0.0
        %557 = vmatpush1.msra.mxu0 0.0
        %558 = vmatprep.mubr.f32.mxu0 0.0
        %559 = vmatmul.mubr.f32.gmra.mrb[0].mxu0 %v492
        %v560 = vpop.f32.mrb[0].mxu0
        %v561 = vadd.f32 %v488, %v560
        %v562 = vpop.f32.mrb[0].mxu0
        %v563 = vadd.f32 %v488, %v562
        %564 = vdwg.mxu0
        %v565 = vmax.f32 %v561, 0.0
        %v566 = vmax.f32 %v563, 0.0
        %v567 = vld [vmem:[#allocation11] sm:$0xff]
        %v568 = vld [vmem:[#allocation11 + $0x8] sm:$0xff]
        %v569 = vld [vmem:[#allocation11 + $0x10] sm:$0xff]
        %v570 = vld [vmem:[#allocation11 + $0x18] sm:$0xff]
        %v571 = vld [vmem:[#allocation13] sm:$0xff]
        %v572 = vld [vmem:[#allocation13 + $0x8] sm:$0xff]
        %v573 = vld [vmem:[#allocation13 + $0x10] sm:$0xff]
        %v574 = vld [vmem:[#allocation13 + $0x18] sm:$0xff]
        %576 = vset.pattern.permute.xlu0 0
        %577 = vperm.xlu0 %576, %v571
        %v578 = vpop.permute.xlu0 %577
        %581 = vset.pattern.permute.xlu0 0
        %582 = vperm.xlu0 %581, %v572
        %v583 = vpop.permute.xlu0 %582
        %586 = vset.pattern.permute.xlu0 0
        %587 = vperm.xlu0 %586, %v573
        %v588 = vpop.permute.xlu0 %587
        %591 = vset.pattern.permute.xlu0 0
        %592 = vperm.xlu0 %591, %v574
        %v593 = vpop.permute.xlu0 %592
        %vm595 = vcmask 31744
        %v597 = vsel %vm595, %v567, 0
        %v600 = vsel %vm595, %v568, 0
        %v603 = vsel %vm595, %v569, 0
        %v606 = vsel %vm595, %v570, 0
        %vm608 = vcmask 1043456
        %v610 = vsel %vm608, %v565, 0
        %v613 = vsel %vm608, %v566, 0
        %615 = vmatprep.subr.mxu0 %v613
        %616 = vmatpush1.msra.mxu0 %v610
        %617 = vmatprep.subr.mxu0 0.0
        %618 = vmatpush1.msra.mxu0 0.0
        %619 = vmatprep.subr.mxu0 0.0
        %620 = vmatpush1.msra.mxu0 0.0
        %621 = vmatprep.subr.mxu0 0.0
        %622 = vmatpush1.msra.mxu0 0.0
        %623 = vmatprep.subr.mxu0 0.0
        %624 = vmatpush1.msra.mxu0 0.0
        %625 = vmatprep.subr.mxu0 0.0
        %626 = vmatpush1.msra.mxu0 0.0
        %627 = vmatprep.subr.mxu0 0.0
        %628 = vmatpush1.msra.mxu0 0.0
        %629 = vmatprep.subr.mxu0 0.0
        %630 = vmatpush1.msra.mxu0 0.0
        %631 = vmatprep.subr.mxu0 0.0
        %632 = vmatpush1.msra.mxu0 0.0
        %633 = vmatprep.subr.mxu0 0.0
        %634 = vmatpush1.msra.mxu0 0.0
        %635 = vmatprep.subr.mxu0 0.0
        %636 = vmatpush1.msra.mxu0 0.0
        %637 = vmatprep.subr.mxu0 0.0
        %638 = vmatpush1.msra.mxu0 0.0
        %639 = vmatprep.subr.mxu0 0.0
        %640 = vmatpush1.msra.mxu0 0.0
        %641 = vmatprep.subr.mxu0 0.0
        %642 = vmatpush1.msra.mxu0 0.0
        %643 = vmatprep.subr.mxu0 0.0
        %644 = vmatpush1.msra.mxu0 0.0
        %645 = vmatprep.subr.mxu0 0.0
        %646 = vmatpush1.msra.mxu0 0.0
        %647 = vmatprep.subr.mxu0 0.0
        %648 = vmatpush1.msra.mxu0 0.0
        %649 = vmatprep.subr.mxu0 0.0
        %650 = vmatpush1.msra.mxu0 0.0
        %651 = vmatprep.subr.mxu0 0.0
        %652 = vmatpush1.msra.mxu0 0.0
        %653 = vmatprep.subr.mxu0 0.0
        %654 = vmatpush1.msra.mxu0 0.0
        %655 = vmatprep.subr.mxu0 0.0
        %656 = vmatpush1.msra.mxu0 0.0
        %657 = vmatprep.subr.mxu0 0.0
        %658 = vmatpush1.msra.mxu0 0.0
        %659 = vmatprep.subr.mxu0 0.0
        %660 = vmatpush1.msra.mxu0 0.0
        %661 = vmatprep.subr.mxu0 0.0
        %662 = vmatpush1.msra.mxu0 0.0
        %663 = vmatprep.subr.mxu0 0.0
        %664 = vmatpush1.msra.mxu0 0.0
        %665 = vmatprep.subr.mxu0 0.0
        %666 = vmatpush1.msra.mxu0 0.0
        %667 = vmatprep.subr.mxu0 0.0
        %668 = vmatpush1.msra.mxu0 0.0
        %669 = vmatprep.subr.mxu0 0.0
        %670 = vmatpush1.msra.mxu0 0.0
        %671 = vmatprep.subr.mxu0 0.0
        %672 = vmatpush1.msra.mxu0 0.0
        %673 = vmatprep.subr.mxu0 0.0
        %674 = vmatpush1.msra.mxu0 0.0
        %675 = vmatprep.subr.mxu0 0.0
        %676 = vmatpush1.msra.mxu0 0.0
        %677 = vmatprep.subr.mxu0 0.0
        %678 = vmatpush1.msra.mxu0 0.0
        %679 = vmatprep.mubr.f32.mxu0 0.0
        %680 = vmatmul.mubr.f32.gmra.mrb[0].mxu0 %v597
        %v681 = vpop.f32.mrb[0].mxu0
        %v682 = vadd.f32 %v578, %v681
        %v683 = vpop.f32.mrb[0].mxu0
        %v684 = vadd.f32 %v578, %v683
        %685 = vmatprep.mubr.f32.mxu0 0.0
        %686 = vmatmul.mubr.f32.gmra.mrb[0].mxu0 %v600
        %v687 = vpop.f32.mrb[0].mxu0
        %v688 = vadd.f32 %v583, %v687
        %v689 = vpop.f32.mrb[0].mxu0
        %v690 = vadd.f32 %v583, %v689
        %691 = vmatprep.mubr.f32.mxu0 0.0
        %692 = vmatmul.mubr.f32.gmra.mrb[0].mxu0 %v603
        %v693 = vpop.f32.mrb[0].mxu0
        %v694 = vadd.f32 %v588, %v693
        %v695 = vpop.f32.mrb[0].mxu0
        %v696 = vadd.f32 %v588, %v695
        %697 = vmatprep.mubr.f32.mxu0 0.0
        %698 = vmatmul.mubr.f32.gmra.mrb[0].mxu0 %v606
        %v699 = vpop.f32.mrb[0].mxu0
        %v700 = vadd.f32 %v593, %v699
        %v701 = vpop.f32.mrb[0].mxu0
        %v702 = vadd.f32 %v593, %v701
        %703 = vdwg.mxu0
        %v704 = vxor.u32 %v682, 2147483648
        %v705 = vxor.u32 %v684, 2147483648
        %v706 = vxor.u32 %v688, 2147483648
        %v707 = vxor.u32 %v690, 2147483648
        %v708 = vxor.u32 %v694, 2147483648
        %v709 = vxor.u32 %v696, 2147483648
        %v710 = vxor.u32 %v700, 2147483648
        %v711 = vxor.u32 %v702, 2147483648
        %v712 = vmul.f32 %v704, 1.442695
        %v713 = vpow.pop %v712
        %v714 = vmul.f32 %v705, 1.442695
        %v715 = vpow.pop %v714
        %v716 = vmul.f32 %v706, 1.442695
        %v717 = vpow.pop %v716
        %v718 = vmul.f32 %v707, 1.442695
        %v719 = vpow.pop %v718
        %v720 = vmul.f32 %v708, 1.442695
        %v721 = vpow.pop %v720
        %v722 = vmul.f32 %v709, 1.442695
        %v723 = vpow.pop %v722
        %v724 = vmul.f32 %v710, 1.442695
        %v725 = vpow.pop %v724
        %v726 = vmul.f32 %v711, 1.442695
        %v727 = vpow.pop %v726
        %v728 = vadd.f32 %v713, 1.0
        %v729 = vadd.f32 %v715, 1.0
        %v730 = vadd.f32 %v717, 1.0
        %v731 = vadd.f32 %v719, 1.0
        %v732 = vadd.f32 %v721, 1.0
        %v733 = vadd.f32 %v723, 1.0
        %v734 = vadd.f32 %v725, 1.0
        %v735 = vadd.f32 %v727, 1.0
        %v736 = vrcp.pop %v728
        %v737 = vmul.f32 1.0, %v736
        %v738 = vrcp.pop %v729
        %v739 = vmul.f32 1.0, %v738
        %v740 = vrcp.pop %v730
        %v741 = vmul.f32 1.0, %v740
        %v742 = vrcp.pop %v731
        %v743 = vmul.f32 1.0, %v742
        %v744 = vrcp.pop %v732
        %v745 = vmul.f32 1.0, %v744
        %v746 = vrcp.pop %v733
        %v747 = vmul.f32 1.0, %v746
        %v748 = vrcp.pop %v734
        %v749 = vmul.f32 1.0, %v748
        %v750 = vrcp.pop %v735
        %v751 = vmul.f32 1.0, %v750
        %v752 = vmul.f32 %v475, %v737
        %v753 = vmul.f32 %v476, %v739
        %v754 = vmul.f32 %v477, %v741
        %v755 = vmul.f32 %v478, %v743
        %v756 = vmul.f32 %v479, %v745
        %v757 = vmul.f32 %v480, %v747
        %v758 = vmul.f32 %v481, %v749
        %v759 = vmul.f32 %v482, %v751
        %760 = vst [vmem:[%s398] sm:$0xff] %v752
        %761 = vst [vmem:[%s398 + $0x8] sm:$0xff] %v753
        %762 = vst [vmem:[%s398 + $0x10] sm:$0xff] %v754
        %763 = vst [vmem:[%s398 + $0x18] sm:$0xff] %v755
        %764 = vst [vmem:[%s398 + $0x20] sm:$0xff] %v756
        %765 = vst [vmem:[%s398 + $0x28] sm:$0xff] %v757
        %766 = vst [vmem:[%s398 + $0x30] sm:$0xff] %v758
        %767 = vst [vmem:[%s398 + $0x38] sm:$0xff] %v759
        %s768 = sand.u32 %s203, 1
        %s769 = scalar_lea.sflag [#allocation4], %s768
        %s770 = sand.u32 %s203, 1
        %s771 = smul.addr %s770, 64
        %s772 = scalar_lea.vmem [#allocation14], %s771
        // Predicated region
        $region77: #{tpu_custom_call.1} parent=47 // pred_check
          %p773 = pneg %p213
        $region78: #{tpu_custom_call.1} parent=47 // pred_check_branch
          %775 = sbr.rel (%p773) target = $region80
        $region79: #{tpu_custom_call.1} parent=47 // pred_region
          %s776 = smul.u32 4, %s31
          %s777 = smul.u32 2, %s32
          %s779 = ssub.s32 1024, 1024
          %780 = vsyncadd %s769, %s779
          %s781 = smul.addr %s776, 2
          %s782 = sadd.s32 %s777, %s781
          %s783 = smul.addr %s782, 128
          %s784 = scalar_lea.hbm %s7, %s783
          %s785 = sshll.u32 %s772, 4
          %s786 = int_to_ptr.vmem [resolvable:$true] %s785
          %791 = dma.vmem_to_hbm [thread:$0]  %s786, 1024, %s784, %s769, 256, 256, 16
        $region80: #{tpu_custom_call.1} parent=47 // pred_fallthru
          _
      $region48: #{tpu_custom_call.1} parent=5 // pred_fallthru
        _
      %p792 = scmp.le.s32.totalorder 2, %s22
      // Predicated region
      $region81: #{tpu_custom_call.1} parent=5 // pred_check
        %p793 = pneg %p792
      $region82: #{tpu_custom_call.1} parent=5 // pred_check_branch
        %795 = sbr.rel (%p793) target = $region84
      $region83: #{tpu_custom_call.1} parent=5 // pred_region
        %s796 = ssub.s32 %s22, 2
        // Predicated region
        $region85: #{tpu_custom_call.1} parent=83 // pred_check
          %p797 = pneg %p219
        $region86: #{tpu_custom_call.1} parent=83 // pred_check_branch
          %799 = sbr.rel (%p797) target = $region88
        $region87: #{tpu_custom_call.1} parent=83 // pred_region
          %s800 = sand.u32 %s204, 1
          %s801 = scalar_lea.sflag [#allocation4], %s800
          %s802 = sand.u32 %s204, 1
          %s803 = smul.addr %s802, 64
          %s804 = scalar_lea.vmem [#allocation14], %s803
          %805 = dma.done %s801, 1024
        $region88: #{tpu_custom_call.1} parent=83 // pred_fallthru
          _
      $region84: #{tpu_custom_call.1} parent=5 // pred_fallthru
        _
    $region6: #{tpu_custom_call.1} parent=1 // loop_footer
      %s26 = sadd.s32 1, %s22
    $region7: #{tpu_custom_call.1} parent=1 // loop_footer_branch
      %21 = sbr.rel target = $region3
    $region8: #{tpu_custom_call.1} parent=1 // loop_exit
      _
    %806 = vsyncpa [#allocation3], 1
    %s807 = scalar_lea.sflag [#allocation3], 1
    %808 = vsyncpa %s807, 1
    %809 = vsyncpa [#allocation6], 1
    %810 = vsyncpa [#allocation9], 1
    %811 = vsyncpa [#allocation12], 1
    %812 = vsyncpa [#allocation4], 1
    %s813 = scalar_lea.sflag [#allocation4], 1
    %814 = vsyncpa %s813, 1

</llo_original>
